<compile_context>
chip_gen: v7x
topology: tpu7x:2x2x1
jax: 0.10.0
libtpu: 0.0.40
codegen_flags: <defaults>
</compile_context>

<pallas_src>
import jax
import jax.numpy as jnp
from jax.experimental import pallas as pl
from jax.experimental.pallas import tpu as pltpu

SELU_ALPHA = 1.6732632423543772
SELU_SCALE = 1.0507009873554805


def _round_up(n, m):
    return ((n + m - 1) // m) * m


def _cdiv(a, b):
    return -(-a // b)


def _selu(x):
    # computed in float32 (inputs are f32 matmul accumulations + f32 bias)
    return SELU_SCALE * jnp.where(x > 0, x, SELU_ALPHA * (jnp.exp(x) - 1.0))


# --------------------------------------------------------------------------
# Kernel
# --------------------------------------------------------------------------
def _make_kernel(out_dtype):
    def kernel(x_ref,
               w1a_ref, b1a_ref, w1b_ref, b1b_ref,
               w2a_ref, b2a_ref, w2b_ref, b2b_ref,
               wc_ref, bc_ref,
               out_ref):
        bf16 = jnp.bfloat16
        f32 = jnp.float32

        x = x_ref[...].astype(bf16)                                   # (TB, D)

        # fc1 block: Linear -> SELU -> (Dropout=id) -> Linear -> SELU -> (Dropout=id)
        h = _selu(jnp.dot(x, w1a_ref[...],
                          preferred_element_type=f32) + b1a_ref[...])  # (TB, H2)
        # w1b's real columns live at [C:C+H] of the W-wide weight -> fc1_wide
        # holds fc1 at columns [C:C+H] and exact zeros elsewhere (SELU(0)=0).
        fc1_wide = _selu(jnp.dot(h.astype(bf16), w1b_ref[...],
                                 preferred_element_type=f32) + b1b_ref[...])  # (TB, W)

        # fc2 block (w2a's real rows are at [C:C+H]; zero rows kill the padding)
        h2 = _selu(jnp.dot(fc1_wide.astype(bf16), w2a_ref[...],
                           preferred_element_type=f32) + b2a_ref[...])  # (TB, H2)
        # w2b's real columns live at [C+H:C+2H] -> fc2_wide holds fc2 there.
        fc2_wide = _selu(jnp.dot(h2.astype(bf16), w2b_ref[...],
                                 preferred_element_type=f32) + b2b_ref[...])  # (TB, W)

        # classifier: wc's real block is at rows [C+H:C+2H], cols [0:C] -> the
        # result already sits at the packed logits columns [0:C].
        logits_wide = (jnp.dot(fc2_wide.astype(bf16), wc_ref[...],
                               preferred_element_type=f32) + bc_ref[...])      # (TB, W)

        # Disjoint column supports -> a plain sum packs all three outputs.
        # Single full-width, lane-dense store (one vst stream, one output DMA).
        out_ref[...] = (logits_wide + fc1_wide + fc2_wide).astype(out_dtype)

    return kernel


# --------------------------------------------------------------------------
# Parameter preparation (hoisted: run ONCE, reuse across forward calls)
# --------------------------------------------------------------------------
def prepare_params(raw):
    """Cast to bf16 and pre-place weights/biases at packed-output offsets."""
    D, H2 = raw["w1a"].shape
    H = raw["w1b"].shape[1]
    C = raw["wc"].shape[1]
    W = _round_up(C + 2 * H, 128)          # packed output width (lane-dense)
    bf16, f32 = jnp.bfloat16, jnp.float32

    def place(a, rows, cols, r0, c0, dtype):
        out = jnp.zeros((rows, cols), dtype)
        return out.at[r0:r0 + a.shape[0], c0:c0 + a.shape[1]].set(a.astype(dtype))

    prepared = {
        "w1a": raw["w1a"].astype(bf16),                      # (D, H2)
        "b1a": raw["b1a"].astype(f32),                       # (1, H2)
        "w1b": place(raw["w1b"], H2, W, 0, C,     bf16),     # fc1 -> cols [C:C+H]
        "b1b": place(raw["b1b"], 1,  W, 0, C,     f32),
        "w2a": place(raw["w2a"], W,  H2, C, 0,    bf16),     # reads fc1 from rows [C:C+H]
        "b2a": raw["b2a"].astype(f32),                       # (1, H2)
        "w2b": place(raw["w2b"], H2, W, 0, C + H, bf16),     # fc2 -> cols [C+H:C+2H]
        "b2b": place(raw["b2b"], 1,  W, 0, C + H, f32),
        "wc":  place(raw["wc"],  W,  W, C + H, 0, bf16),     # logits -> cols [0:C]
        "bc":  place(raw["bc"],  1,  W, 0, 0,     f32),
    }
    dims = {"D": D, "H": H, "H2": H2, "C": C, "W": W}
    return prepared, dims


# --------------------------------------------------------------------------
# Forward wrapper
# --------------------------------------------------------------------------
def model_forward(x, prepared, dims, *, max_tile_b=1024, out_dtype=jnp.float32):
    """Full MLP forward in one Pallas kernel.

    x: (B, input_size) float32
    prepared, dims: output of prepare_params()
    Returns (logits, fc1, fc2) as float32, matching the torch module (eval mode).
    """
    B, D = x.shape
    assert D == dims["D"]
    H, H2, C, W = dims["H"], dims["H2"], dims["C"], dims["W"]

    # Batch tiling: >=2 grid steps (so both v7x TCs get work), tile <= 1024,
    # multiple of 8 sublanes, padding waste bounded to < one tile.
    n_tiles = max(2, _cdiv(B, max_tile_b))
    tile_b = min(_round_up(_cdiv(B, n_tiles), 8), _round_up(B, 8))
    B_p = _round_up(B, tile_b)
    if B_p != B:
        x = jnp.pad(x, ((0, B_p - B), (0, 0)))
    grid = (B_p // tile_b,)

    def resident(shape):
        return pl.BlockSpec(shape, lambda i: (0, 0))   # VMEM-resident across steps

    in_specs = [
        pl.BlockSpec((tile_b, D), lambda i: (i, 0)),   # x, raw f32 (no wrapper pad/cast)
        resident((D, H2)),  resident((1, H2)),
        resident((H2, W)),  resident((1, W)),
        resident((W, H2)),  resident((1, H2)),
        resident((H2, W)),  resident((1, W)),
        resident((W, W)),   resident((1, W)),
    ]
    out_specs = pl.BlockSpec((tile_b, W), lambda i: (i, 0))

    # Advisory cost estimate (kernel is HBM-bound; helps XLA schedule neighbors).
    flops = 2 * B_p * (D * H2 + H2 * W + W * H2 + H2 * W + W * W)
    transcendentals = B_p * (2 * H2 + 2 * W)
    out_itemsize = jnp.dtype(out_dtype).itemsize
    bytes_accessed = (x.size * x.dtype.itemsize + B_p * W * out_itemsize
                      + sum(int(v.size) * v.dtype.itemsize for v in prepared.values()))

    packed = pl.pallas_call(
        _make_kernel(out_dtype),
        out_shape=jax.ShapeDtypeStruct((B_p, W), out_dtype),
        grid=grid,
        in_specs=in_specs,
        out_specs=out_specs,
        compiler_params=pltpu.CompilerParams(
            dimension_semantics=(pltpu.PARALLEL,)),
        cost_estimate=pl.CostEstimate(flops=flops,
                                      transcendentals=transcendentals,
                                      bytes_accessed=bytes_accessed),
    )(x, prepared["w1a"], prepared["b1a"], prepared["w1b"], prepared["b1b"],
      prepared["w2a"], prepared["b2a"], prepared["w2b"], prepared["b2b"],
      prepared["wc"], prepared["bc"])

    f32 = jnp.float32
    logits = packed[:B, 0:C].astype(f32)
    fc1 = packed[:B, C:C + H].astype(f32)
    fc2 = packed[:B, C + H:C + 2 * H].astype(f32)
    return logits, fc1, fc2


# --------------------------------------------------------------------------
# Synthetic init + reference
# --------------------------------------------------------------------------
def init_params(key, input_size, hidden_size, category_size):
    """Deterministic synthetic parameter init (uniform, torch-Linear-like scale)."""
    def linear(key, fan_in, fan_out):
        kw, kb = jax.random.split(key)
        bound = 1.0 / jnp.sqrt(float(fan_in))
        w = jax.random.uniform(kw, (fan_in, fan_out), jnp.float32, -bound, bound)
        b = jax.random.uniform(kb, (1, fan_out), jnp.float32, -bound, bound)
        return w, b

    keys = jax.random.split(key, 5)
    w1a, b1a = linear(keys[0], input_size, 2 * hidden_size)
    w1b, b1b = linear(keys[1], 2 * hidden_size, hidden_size)
    w2a, b2a = linear(keys[2], hidden_size, 2 * hidden_size)
    w2b, b2b = linear(keys[3], 2 * hidden_size, hidden_size)
    wc, bc = linear(keys[4], hidden_size, category_size)
    # self.weight = nn.Parameter(torch.ones(2)) is unused in forward; kept for parity.
    return {
        "w1a": w1a, "b1a": b1a, "w1b": w1b, "b1b": b1b,
        "w2a": w2a, "b2a": b2a, "w2b": w2b, "b2b": b2b,
        "wc": wc, "bc": bc,
        "weight": jnp.ones((2,), jnp.float32),
    }


def _reference_bf16(x, p):
    """Pure-JAX reference mirroring the kernel's bf16-in / f32-accum policy."""
    bf16 = jnp.bfloat16

    def lin(a, w, b):
        return jnp.dot(a.astype(bf16), w.astype(bf16),
                       preferred_element_type=jnp.float32) + b

    h = _selu(lin(x, p["w1a"], p["b1a"]))
    fc1 = _selu(lin(h, p["w1b"], p["b1b"]))
    h2 = _selu(lin(fc1, p["w2a"], p["b2a"]))
    fc2 = _selu(lin(h2, p["w2b"], p["b2b"]))
    logits = lin(fc2, p["wc"], p["bc"])
    return logits, fc1, fc2


if __name__ == "__main__":
    input_size = 32
    hidden_size = 32
    category_size = 8
    batch = 16   # -> tile_b=8, grid=(2,): exercises the parallel batch axis

    key = jax.random.PRNGKey(0)
    kx, kp = jax.random.split(key)
    x = jax.random.normal(kx, (batch, input_size), jnp.float32)

    raw_params = init_params(kp, input_size, hidden_size, category_size)
    prepared, dims = prepare_params(raw_params)   # hoisted: pad/cast once

    fwd = jax.jit(lambda xb: model_forward(xb, prepared, dims))
    logits, fc1, fc2 = fwd(x)
    jax.block_until_ready((logits, fc1, fc2))

    # sanity check against a pure-JAX reference with identical precision policy
    ref_logits, ref_fc1, ref_fc2 = _reference_bf16(x, raw_params)
    assert logits.shape == (batch, category_size)
    assert fc1.shape == (batch, hidden_size) and fc2.shape == (batch, hidden_size)
    assert jnp.allclose(logits, ref_logits, atol=2e-3, rtol=2e-3)
    assert jnp.allclose(fc1, ref_fc1, atol=2e-3, rtol=2e-3)
    assert jnp.allclose(fc2, ref_fc2, atol=2e-3, rtol=2e-3)

    print("KERNEL_OK")
</pallas_src>

<mosaic_0001>
module attributes {stable_mosaic.version = 11 : i64} {
  func.func @kernel(%arg0: i32, %arg1: memref<8x32xf32, #tpu.memory_space<vmem>>, %arg2: memref<32x64xbf16, #tpu.memory_space<vmem>>, %arg3: memref<1x64xf32, #tpu.memory_space<vmem>>, %arg4: memref<64x128xbf16, #tpu.memory_space<vmem>>, %arg5: memref<1x128xf32, #tpu.memory_space<vmem>>, %arg6: memref<128x64xbf16, #tpu.memory_space<vmem>>, %arg7: memref<1x64xf32, #tpu.memory_space<vmem>>, %arg8: memref<64x128xbf16, #tpu.memory_space<vmem>>, %arg9: memref<1x128xf32, #tpu.memory_space<vmem>>, %arg10: memref<128x128xbf16, #tpu.memory_space<vmem>>, %arg11: memref<1x128xf32, #tpu.memory_space<vmem>>, %arg12: memref<8x128xf32, #tpu.memory_space<vmem>>) attributes {dimension_semantics = [#tpu.dimension_semantics<parallel>], iteration_bounds = array<i64: 2>, scalar_prefetch = 0 : i64, scratch_operands = 0 : i64, tpu.core_type = #tpu.core_type<tc>, window_params = [{transform_indices = @transform_0, window_bounds = array<i64: 8, 32>}, {pipeline_mode = #tpu.pipeline_mode<synchronous>, transform_indices = @transform_1, window_bounds = array<i64: 32, 64>}, {pipeline_mode = #tpu.pipeline_mode<synchronous>, transform_indices = @transform_2, window_bounds = array<i64: 1, 64>}, {pipeline_mode = #tpu.pipeline_mode<synchronous>, transform_indices = @transform_3, window_bounds = array<i64: 64, 128>}, {pipeline_mode = #tpu.pipeline_mode<synchronous>, transform_indices = @transform_4, window_bounds = array<i64: 1, 128>}, {pipeline_mode = #tpu.pipeline_mode<synchronous>, transform_indices = @transform_5, window_bounds = array<i64: 128, 64>}, {pipeline_mode = #tpu.pipeline_mode<synchronous>, transform_indices = @transform_6, window_bounds = array<i64: 1, 64>}, {pipeline_mode = #tpu.pipeline_mode<synchronous>, transform_indices = @transform_7, window_bounds = array<i64: 64, 128>}, {pipeline_mode = #tpu.pipeline_mode<synchronous>, transform_indices = @transform_8, window_bounds = array<i64: 1, 128>}, {pipeline_mode = #tpu.pipeline_mode<synchronous>, transform_indices = @transform_9, window_bounds = array<i64: 128, 128>}, {pipeline_mode = #tpu.pipeline_mode<synchronous>, transform_indices = @transform_10, window_bounds = array<i64: 1, 128>}, {transform_indices = @transform_11, window_bounds = array<i64: 8, 128>}]} {
    %c0 = arith.constant 0 : index
    %c0_0 = arith.constant 0 : index
    %0 = vector.load %arg1[%c0, %c0_0] : memref<8x32xf32, #tpu.memory_space<vmem>>, vector<8x32xf32>
    %1 = arith.truncf %0 : vector<8x32xf32> to vector<8x32xbf16>
    %c0_1 = arith.constant 0 : index
    %c0_2 = arith.constant 0 : index
    %2 = vector.load %arg2[%c0_1, %c0_2] : memref<32x64xbf16, #tpu.memory_space<vmem>>, vector<32x64xbf16>
    %cst = arith.constant dense<0.000000e+00> : vector<8x64xf32>
    %3 = tpu.matmul %1, %2, %cst {dimension_numbers = #tpu.dot_dimension_numbers<[1], [0], [0], [1], [0, 0, 1, 1], [], []>} : vector<8x32xbf16>, vector<32x64xbf16>, vector<8x64xf32> -> vector<8x64xf32>
    %c0_3 = arith.constant 0 : index
    %c0_4 = arith.constant 0 : index
    %4 = vector.load %arg3[%c0_3, %c0_4] : memref<1x64xf32, #tpu.memory_space<vmem>>, vector<1x64xf32>
    %5 = vector.broadcast %4 : vector<1x64xf32> to vector<8x64xf32>
    %6 = arith.addf %3, %5 : vector<8x64xf32>
    %cst_5 = arith.constant 0.000000e+00 : f32
    %7 = vector.broadcast %cst_5 : f32 to vector<8x64xf32>
    %8 = arith.cmpf ogt, %6, %7 : vector<8x64xf32>
    %9 = math.exp %6 : vector<8x64xf32>
    %cst_6 = arith.constant 1.000000e+00 : f32
    %10 = vector.broadcast %cst_6 : f32 to vector<8x64xf32>
    %11 = arith.subf %9, %10 : vector<8x64xf32>
    %cst_7 = arith.constant 1.67326319 : f32
    %12 = vector.broadcast %cst_7 : f32 to vector<8x64xf32>
    %13 = arith.mulf %12, %11 : vector<8x64xf32>
    %14 = arith.select %8, %6, %13 : vector<8x64xi1>, vector<8x64xf32>
    %cst_8 = arith.constant 1.05070102 : f32
    %15 = vector.broadcast %cst_8 : f32 to vector<8x64xf32>
    %16 = arith.mulf %15, %14 : vector<8x64xf32>
    %17 = arith.truncf %16 : vector<8x64xf32> to vector<8x64xbf16>
    %c0_9 = arith.constant 0 : index
    %c0_10 = arith.constant 0 : index
    %18 = vector.load %arg4[%c0_9, %c0_10] : memref<64x128xbf16, #tpu.memory_space<vmem>>, vector<64x128xbf16>
    %cst_11 = arith.constant dense<0.000000e+00> : vector<8x128xf32>
    %19 = tpu.matmul %17, %18, %cst_11 {dimension_numbers = #tpu.dot_dimension_numbers<[1], [0], [0], [1], [0, 0, 1, 1], [], []>} : vector<8x64xbf16>, vector<64x128xbf16>, vector<8x128xf32> -> vector<8x128xf32>
    %c0_12 = arith.constant 0 : index
    %c0_13 = arith.constant 0 : index
    %20 = vector.load %arg5[%c0_12, %c0_13] : memref<1x128xf32, #tpu.memory_space<vmem>>, vector<1x128xf32>
    %21 = vector.broadcast %20 : vector<1x128xf32> to vector<8x128xf32>
    %22 = arith.addf %19, %21 : vector<8x128xf32>
    %cst_14 = arith.constant 0.000000e+00 : f32
    %23 = vector.broadcast %cst_14 : f32 to vector<8x128xf32>
    %24 = arith.cmpf ogt, %22, %23 : vector<8x128xf32>
    %25 = math.exp %22 : vector<8x128xf32>
    %cst_15 = arith.constant 1.000000e+00 : f32
    %26 = vector.broadcast %cst_15 : f32 to vector<8x128xf32>
    %27 = arith.subf %25, %26 : vector<8x128xf32>
    %cst_16 = arith.constant 1.67326319 : f32
    %28 = vector.broadcast %cst_16 : f32 to vector<8x128xf32>
    %29 = arith.mulf %28, %27 : vector<8x128xf32>
    %30 = arith.select %24, %22, %29 : vector<8x128xi1>, vector<8x128xf32>
    %cst_17 = arith.constant 1.05070102 : f32
    %31 = vector.broadcast %cst_17 : f32 to vector<8x128xf32>
    %32 = arith.mulf %31, %30 : vector<8x128xf32>
    %33 = arith.truncf %32 : vector<8x128xf32> to vector<8x128xbf16>
    %c0_18 = arith.constant 0 : index
    %c0_19 = arith.constant 0 : index
    %34 = vector.load %arg6[%c0_18, %c0_19] : memref<128x64xbf16, #tpu.memory_space<vmem>>, vector<128x64xbf16>
    %cst_20 = arith.constant dense<0.000000e+00> : vector<8x64xf32>
    %35 = tpu.matmul %33, %34, %cst_20 {dimension_numbers = #tpu.dot_dimension_numbers<[1], [0], [0], [1], [0, 0, 1, 1], [], []>} : vector<8x128xbf16>, vector<128x64xbf16>, vector<8x64xf32> -> vector<8x64xf32>
    %c0_21 = arith.constant 0 : index
    %c0_22 = arith.constant 0 : index
    %36 = vector.load %arg7[%c0_21, %c0_22] : memref<1x64xf32, #tpu.memory_space<vmem>>, vector<1x64xf32>
    %37 = vector.broadcast %36 : vector<1x64xf32> to vector<8x64xf32>
    %38 = arith.addf %35, %37 : vector<8x64xf32>
    %cst_23 = arith.constant 0.000000e+00 : f32
    %39 = vector.broadcast %cst_23 : f32 to vector<8x64xf32>
    %40 = arith.cmpf ogt, %38, %39 : vector<8x64xf32>
    %41 = math.exp %38 : vector<8x64xf32>
    %cst_24 = arith.constant 1.000000e+00 : f32
    %42 = vector.broadcast %cst_24 : f32 to vector<8x64xf32>
    %43 = arith.subf %41, %42 : vector<8x64xf32>
    %cst_25 = arith.constant 1.67326319 : f32
    %44 = vector.broadcast %cst_25 : f32 to vector<8x64xf32>
    %45 = arith.mulf %44, %43 : vector<8x64xf32>
    %46 = arith.select %40, %38, %45 : vector<8x64xi1>, vector<8x64xf32>
    %cst_26 = arith.constant 1.05070102 : f32
    %47 = vector.broadcast %cst_26 : f32 to vector<8x64xf32>
    %48 = arith.mulf %47, %46 : vector<8x64xf32>
    %49 = arith.truncf %48 : vector<8x64xf32> to vector<8x64xbf16>
    %c0_27 = arith.constant 0 : index
    %c0_28 = arith.constant 0 : index
    %50 = vector.load %arg8[%c0_27, %c0_28] : memref<64x128xbf16, #tpu.memory_space<vmem>>, vector<64x128xbf16>
    %cst_29 = arith.constant dense<0.000000e+00> : vector<8x128xf32>
    %51 = tpu.matmul %49, %50, %cst_29 {dimension_numbers = #tpu.dot_dimension_numbers<[1], [0], [0], [1], [0, 0, 1, 1], [], []>} : vector<8x64xbf16>, vector<64x128xbf16>, vector<8x128xf32> -> vector<8x128xf32>
    %c0_30 = arith.constant 0 : index
    %c0_31 = arith.constant 0 : index
    %52 = vector.load %arg9[%c0_30, %c0_31] : memref<1x128xf32, #tpu.memory_space<vmem>>, vector<1x128xf32>
    %53 = vector.broadcast %52 : vector<1x128xf32> to vector<8x128xf32>
    %54 = arith.addf %51, %53 : vector<8x128xf32>
    %cst_32 = arith.constant 0.000000e+00 : f32
    %55 = vector.broadcast %cst_32 : f32 to vector<8x128xf32>
    %56 = arith.cmpf ogt, %54, %55 : vector<8x128xf32>
    %57 = math.exp %54 : vector<8x128xf32>
    %cst_33 = arith.constant 1.000000e+00 : f32
    %58 = vector.broadcast %cst_33 : f32 to vector<8x128xf32>
    %59 = arith.subf %57, %58 : vector<8x128xf32>
    %cst_34 = arith.constant 1.67326319 : f32
    %60 = vector.broadcast %cst_34 : f32 to vector<8x128xf32>
    %61 = arith.mulf %60, %59 : vector<8x128xf32>
    %62 = arith.select %56, %54, %61 : vector<8x128xi1>, vector<8x128xf32>
    %cst_35 = arith.constant 1.05070102 : f32
    %63 = vector.broadcast %cst_35 : f32 to vector<8x128xf32>
    %64 = arith.mulf %63, %62 : vector<8x128xf32>
    %65 = arith.truncf %64 : vector<8x128xf32> to vector<8x128xbf16>
    %c0_36 = arith.constant 0 : index
    %c0_37 = arith.constant 0 : index
    %66 = vector.load %arg10[%c0_36, %c0_37] : memref<128x128xbf16, #tpu.memory_space<vmem>>, vector<128x128xbf16>
    %cst_38 = arith.constant dense<0.000000e+00> : vector<8x128xf32>
    %67 = tpu.matmul %65, %66, %cst_38 {dimension_numbers = #tpu.dot_dimension_numbers<[1], [0], [0], [1], [0, 0, 1, 1], [], []>} : vector<8x128xbf16>, vector<128x128xbf16>, vector<8x128xf32> -> vector<8x128xf32>
    %c0_39 = arith.constant 0 : index
    %c0_40 = arith.constant 0 : index
    %68 = vector.load %arg11[%c0_39, %c0_40] : memref<1x128xf32, #tpu.memory_space<vmem>>, vector<1x128xf32>
    %69 = vector.broadcast %68 : vector<1x128xf32> to vector<8x128xf32>
    %70 = arith.addf %67, %69 : vector<8x128xf32>
    %71 = arith.addf %70, %32 : vector<8x128xf32>
    %72 = arith.addf %71, %64 : vector<8x128xf32>
    %c0_41 = arith.constant 0 : index
    %c0_42 = arith.constant 0 : index
    %73 = vector.load %arg12[%c0_41, %c0_42] : memref<8x128xf32, #tpu.memory_space<vmem>>, vector<8x128xf32>
    tpu.vector_store %arg12[%c0_41, %c0_42], %72 {strides = array<i32>} : memref<8x128xf32, #tpu.memory_space<vmem>>, vector<8x128xf32>,
    return
  }
  func.func @transform_0(%arg0: i32) -> (i32, i32) {
    %c0_i32 = arith.constant 0 : i32
    %c0_i32_0 = arith.constant 0 : i32
    return %arg0, %c0_i32 : i32, i32
  }
  func.func @transform_1(%arg0: i32) -> (i32, i32) {
    %c0_i32 = arith.constant 0 : i32
    %c0_i32_0 = arith.constant 0 : i32
    %c0_i32_1 = arith.constant 0 : i32
    return %c0_i32, %c0_i32_0 : i32, i32
  }
  func.func @transform_2(%arg0: i32) -> (i32, i32) {
    %c0_i32 = arith.constant 0 : i32
    %c0_i32_0 = arith.constant 0 : i32
    %c0_i32_1 = arith.constant 0 : i32
    return %c0_i32, %c0_i32_0 : i32, i32
  }
  func.func @transform_3(%arg0: i32) -> (i32, i32) {
    %c0_i32 = arith.constant 0 : i32
    %c0_i32_0 = arith.constant 0 : i32
    %c0_i32_1 = arith.constant 0 : i32
    return %c0_i32, %c0_i32_0 : i32, i32
  }
  func.func @transform_4(%arg0: i32) -> (i32, i32) {
    %c0_i32 = arith.constant 0 : i32
    %c0_i32_0 = arith.constant 0 : i32
    %c0_i32_1 = arith.constant 0 : i32
    return %c0_i32, %c0_i32_0 : i32, i32
  }
  func.func @transform_5(%arg0: i32) -> (i32, i32) {
    %c0_i32 = arith.constant 0 : i32
    %c0_i32_0 = arith.constant 0 : i32
    %c0_i32_1 = arith.constant 0 : i32
    return %c0_i32, %c0_i32_0 : i32, i32
  }
  func.func @transform_6(%arg0: i32) -> (i32, i32) {
    %c0_i32 = arith.constant 0 : i32
    %c0_i32_0 = arith.constant 0 : i32
    %c0_i32_1 = arith.constant 0 : i32
    return %c0_i32, %c0_i32_0 : i32, i32
  }
  func.func @transform_7(%arg0: i32) -> (i32, i32) {
    %c0_i32 = arith.constant 0 : i32
    %c0_i32_0 = arith.constant 0 : i32
    %c0_i32_1 = arith.constant 0 : i32
    return %c0_i32, %c0_i32_0 : i32, i32
  }
  func.func @transform_8(%arg0: i32) -> (i32, i32) {
    %c0_i32 = arith.constant 0 : i32
    %c0_i32_0 = arith.constant 0 : i32
    %c0_i32_1 = arith.constant 0 : i32
    return %c0_i32, %c0_i32_0 : i32, i32
  }
  func.func @transform_9(%arg0: i32) -> (i32, i32) {
    %c0_i32 = arith.constant 0 : i32
    %c0_i32_0 = arith.constant 0 : i32
    %c0_i32_1 = arith.constant 0 : i32
    return %c0_i32, %c0_i32_0 : i32, i32
  }
  func.func @transform_10(%arg0: i32) -> (i32, i32) {
    %c0_i32 = arith.constant 0 : i32
    %c0_i32_0 = arith.constant 0 : i32
    %c0_i32_1 = arith.constant 0 : i32
    return %c0_i32, %c0_i32_0 : i32, i32
  }
  func.func @transform_11(%arg0: i32) -> (i32, i32) {
    %c0_i32 = arith.constant 0 : i32
    %c0_i32_0 = arith.constant 0 : i32
    return %arg0, %c0_i32 : i32, i32
  }
}

</mosaic_0001>

<llo_original>
// kernel: _lambda_.1
$region0: #{_lambda_.1}
  #allocation0 [shape = 'u32[]', space=smem, size = 0x4, offset = 0x4, fixed_abs, tag = 'smem constant byte address 0x4 - core index']
  #allocation1 [shape = 'u32[144,128]{1,0:T(1,128)}', space=vmem, size = 0x12000, scoped, tag = 'internal scratch']
  %s0 = inlined_call_operand.vmem [shape: f32[16,32], index: 0, kind: input, shape index: {}]
  %s1 = inlined_call_operand.hbm [shape: bf16[32,64], index: 1, kind: input, shape index: {}]
  %s2 = inlined_call_operand.vmem [shape: f32[1,64], index: 2, kind: input, shape index: {}]
  %s3 = inlined_call_operand.vmem [shape: bf16[64,128], index: 3, kind: input, shape index: {}]
  %s4 = inlined_call_operand.vmem [shape: f32[1,128], index: 4, kind: input, shape index: {}]
  %s5 = inlined_call_operand.hbm [shape: bf16[128,64], index: 5, kind: input, shape index: {}]
  %s6 = inlined_call_operand.vmem [shape: f32[1,64], index: 6, kind: input, shape index: {}]
  %s7 = inlined_call_operand.hbm [shape: bf16[64,128], index: 7, kind: input, shape index: {}]
  %s8 = inlined_call_operand.vmem [shape: f32[1,128], index: 8, kind: input, shape index: {}]
  %s9 = inlined_call_operand.hbm [shape: bf16[128,128], index: 9, kind: input, shape index: {}]
  %s10 = inlined_call_operand.vmem [shape: f32[1,128], index: 10, kind: input, shape index: {}]
  %s11 = inlined_call_operand.vmem [shape: f32[16,128], index: 11, kind: output, shape index: {}]
  %s12 = sld [smem:[#allocation0]]
  $region93: #{_lambda_.1} parent=0
    _
  %s14 = ssub.s32 1, %s12
  %s15 = scalar_select 0, %s14, %s12
  $region1: #{_lambda_.1} parent=0
    #allocation2 [shape = 'u8[8192]{0}', space=vmem, size = 0x2000, scoped, tag = 'input window, operand 1, single buffered']
    #allocation3 [shape = 's32[2]{0}', space=sflag, size = 0x8, scoped, tag = 'scoped memory for _lambda_.1']
    #allocation4 [shape = 'u8[32768]{0}', space=vmem, size = 0x8000, scoped, tag = 'input window, operand 5, single buffered']
    #allocation5 [shape = 's32[1]{0}', space=sflag, size = 0x4, scoped, tag = 'scoped memory for _lambda_.1']
    #allocation6 [shape = 'u8[16384]{0}', space=vmem, size = 0x4000, scoped, tag = 'input window, operand 7, single buffered']
    #allocation7 [shape = 'u8[32768]{0}', space=vmem, size = 0x8000, scoped, tag = 'input window, operand 9, single buffered']
    #allocation8 [shape = 's32[1]{0}', space=sflag, size = 0x4, scoped, tag = 'scoped memory for _lambda_.1']
    %16 = vsyncpa [#allocation3], 0
    %17 = vsyncpa [#allocation5], 0
    %18 = vsyncpa [#allocation8], 0
    loop: start=0, step=1, limit=4
    $region2: #{_lambda_.1} parent=1 // loop_pre_header
      _
    $region3: #{_lambda_.1} parent=1 // loop_header
      %s20 = sphi 0, %s24
      %p21 = scmp.ge.s32.totalorder %s20, 4
      %s30 = sphi 0, %s32
      %s33 = sphi 0, %s30
      %s34 = sphi 0, %s33
      %s50 = sphi 0, %s34
      %s54 = sphi 0, %s54
      %s56 = sphi 0, %s54
      %s57 = sphi 0, %s56
      %s71 = sphi 0, %s57
      %s75 = sphi 0, %s75
      %s77 = sphi 0, %s75
      %s78 = sphi 0, %s77
      %s92 = sphi 0, %s78
      %s96 = sphi 0, %s96
      %s98 = sphi 0, %s96
      %s99 = sphi 0, %s98
      %s113 = sphi 0, %s99
      %s117 = sphi 0, %s117
      %s119 = sphi 0, %s117
      %s120 = sphi 0, %s119
      %s134 = sphi 0, %s120
      %s138 = sphi 0, %s138
      %s140 = sphi 0, %s138
      %s141 = sphi 0, %s140
      %s155 = sphi 0, %s141
      %s159 = sphi 0, %s159
      %s161 = sphi 0, %s159
      %s162 = sphi 0, %s161
      %s176 = sphi 0, %s162
      %s180 = sphi 0, %s180
      %s182 = sphi 0, %s180
      %s183 = sphi 0, %s182
      %s197 = sphi 0, %s183
      %s201 = sphi 0, %s201
      %s203 = sphi 0, %s201
      %s204 = sphi 0, %s203
      %s218 = sphi 0, %s204
      %s222 = sphi 0, %s222
      %s224 = sphi 0, %s222
      %s225 = sphi 0, %s224
      %s239 = sphi 0, %s225
      %s243 = sphi 0, %s243
      %s245 = sphi 0, %s243
      %s246 = sphi 0, %s245
      %s260 = sphi 0, %s246
      %s266 = sphi 0, %s268
      %s269 = sphi 0, %s266
      %s270 = sphi 0, %s269
      %s286 = sphi 0, %s270
    $region4: #{_lambda_.1} parent=1 // loop_header_branch
      %23 = sbr.rel (%p21) target = $region8
    $region5: #{_lambda_.1} parent=1 // loop_body
      %s25 = ssub.s32 %s20, 1
      %s26 = ssub.s32 %s20, 2
      %s27 = sadd.s32 %s20, 1
      %s28 = ssub.s32 %s20, %s27
      %p29 = scmp.eq.s32.totalorder %s28, 0
      %s31 = sadd.s32 %s30, 1
      %s32 = scalar_select %p29, %s30, %s31
      %p35 = pneg %p29
      %p36 = scmp.eq.s32.totalorder %s20, 1
      %p37 = por %p35, %p36
      %p38 = scmp.ne.s32.totalorder %s30, %s33
      %p39 = scmp.eq.s32.totalorder %s20, 0
      %p40 = por %p38, %p39
      %p41 = scmp.ne.s32.totalorder %s30, %s33
      %p42 = scmp.eq.s32.totalorder %s25, 1
      %p43 = por %p41, %p42
      %p44 = scmp.ne.s32.totalorder %s33, %s34
      %p45 = scmp.eq.s32.totalorder %s25, 0
      %p46 = por %p44, %p45
      %p47 = scmp.ne.s32.totalorder %s33, %s34
      %p48 = scmp.eq.s32.totalorder %s26, 1
      %p49 = por %p47, %p48
      %p51 = scmp.ne.s32.totalorder %s34, %s50
      %p52 = scmp.eq.s32.totalorder %s26, 0
      %p53 = por %p51, %p52
      %s55 = sadd.s32 %s54, 1
      %p58 = scmp.eq.s32.totalorder %s20, 1
      %p59 = scmp.ne.s32.totalorder %s54, %s56
      %p60 = scmp.eq.s32.totalorder %s20, 0
      %p61 = por %p59, %p60
      %p62 = scmp.ne.s32.totalorder %s54, %s56
      %p63 = scmp.eq.s32.totalorder %s25, 1
      %p64 = por %p62, %p63
      %p65 = scmp.ne.s32.totalorder %s56, %s57
      %p66 = scmp.eq.s32.totalorder %s25, 0
      %p67 = por %p65, %p66
      %p68 = scmp.ne.s32.totalorder %s56, %s57
      %p69 = scmp.eq.s32.totalorder %s26, 1
      %p70 = por %p68, %p69
      %p72 = scmp.ne.s32.totalorder %s57, %s71
      %p73 = scmp.eq.s32.totalorder %s26, 0
      %p74 = por %p72, %p73
      %s76 = sadd.s32 %s75, 1
      %p79 = scmp.eq.s32.totalorder %s20, 1
      %p80 = scmp.ne.s32.totalorder %s75, %s77
      %p81 = scmp.eq.s32.totalorder %s20, 0
      %p82 = por %p80, %p81
      %p83 = scmp.ne.s32.totalorder %s75, %s77
      %p84 = scmp.eq.s32.totalorder %s25, 1
      %p85 = por %p83, %p84
      %p86 = scmp.ne.s32.totalorder %s77, %s78
      %p87 = scmp.eq.s32.totalorder %s25, 0
      %p88 = por %p86, %p87
      %p89 = scmp.ne.s32.totalorder %s77, %s78
      %p90 = scmp.eq.s32.totalorder %s26, 1
      %p91 = por %p89, %p90
      %p93 = scmp.ne.s32.totalorder %s78, %s92
      %p94 = scmp.eq.s32.totalorder %s26, 0
      %p95 = por %p93, %p94
      %s97 = sadd.s32 %s96, 1
      %p100 = scmp.eq.s32.totalorder %s20, 1
      %p101 = scmp.ne.s32.totalorder %s96, %s98
      %p102 = scmp.eq.s32.totalorder %s20, 0
      %p103 = por %p101, %p102
      %p104 = scmp.ne.s32.totalorder %s96, %s98
      %p105 = scmp.eq.s32.totalorder %s25, 1
      %p106 = por %p104, %p105
      %p107 = scmp.ne.s32.totalorder %s98, %s99
      %p108 = scmp.eq.s32.totalorder %s25, 0
      %p109 = por %p107, %p108
      %p110 = scmp.ne.s32.totalorder %s98, %s99
      %p111 = scmp.eq.s32.totalorder %s26, 1
      %p112 = por %p110, %p111
      %p114 = scmp.ne.s32.totalorder %s99, %s113
      %p115 = scmp.eq.s32.totalorder %s26, 0
      %p116 = por %p114, %p115
      %s118 = sadd.s32 %s117, 1
      %p121 = scmp.eq.s32.totalorder %s20, 1
      %p122 = scmp.ne.s32.totalorder %s117, %s119
      %p123 = scmp.eq.s32.totalorder %s20, 0
      %p124 = por %p122, %p123
      %p125 = scmp.ne.s32.totalorder %s117, %s119
      %p126 = scmp.eq.s32.totalorder %s25, 1
      %p127 = por %p125, %p126
      %p128 = scmp.ne.s32.totalorder %s119, %s120
      %p129 = scmp.eq.s32.totalorder %s25, 0
      %p130 = por %p128, %p129
      %p131 = scmp.ne.s32.totalorder %s119, %s120
      %p132 = scmp.eq.s32.totalorder %s26, 1
      %p133 = por %p131, %p132
      %p135 = scmp.ne.s32.totalorder %s120, %s134
      %p136 = scmp.eq.s32.totalorder %s26, 0
      %p137 = por %p135, %p136
      %s139 = sadd.s32 %s138, 1
      %p142 = scmp.eq.s32.totalorder %s20, 1
      %p143 = scmp.ne.s32.totalorder %s138, %s140
      %p144 = scmp.eq.s32.totalorder %s20, 0
      %p145 = por %p143, %p144
      %p146 = scmp.ne.s32.totalorder %s138, %s140
      %p147 = scmp.eq.s32.totalorder %s25, 1
      %p148 = por %p146, %p147
      %p149 = scmp.ne.s32.totalorder %s140, %s141
      %p150 = scmp.eq.s32.totalorder %s25, 0
      %p151 = por %p149, %p150
      %p152 = scmp.ne.s32.totalorder %s140, %s141
      %p153 = scmp.eq.s32.totalorder %s26, 1
      %p154 = por %p152, %p153
      %p156 = scmp.ne.s32.totalorder %s141, %s155
      %p157 = scmp.eq.s32.totalorder %s26, 0
      %p158 = por %p156, %p157
      %s160 = sadd.s32 %s159, 1
      %p163 = scmp.eq.s32.totalorder %s20, 1
      %p164 = scmp.ne.s32.totalorder %s159, %s161
      %p165 = scmp.eq.s32.totalorder %s20, 0
      %p166 = por %p164, %p165
      %p167 = scmp.ne.s32.totalorder %s159, %s161
      %p168 = scmp.eq.s32.totalorder %s25, 1
      %p169 = por %p167, %p168
      %p170 = scmp.ne.s32.totalorder %s161, %s162
      %p171 = scmp.eq.s32.totalorder %s25, 0
      %p172 = por %p170, %p171
      %p173 = scmp.ne.s32.totalorder %s161, %s162
      %p174 = scmp.eq.s32.totalorder %s26, 1
      %p175 = por %p173, %p174
      %p177 = scmp.ne.s32.totalorder %s162, %s176
      %p178 = scmp.eq.s32.totalorder %s26, 0
      %p179 = por %p177, %p178
      %s181 = sadd.s32 %s180, 1
      %p184 = scmp.eq.s32.totalorder %s20, 1
      %p185 = scmp.ne.s32.totalorder %s180, %s182
      %p186 = scmp.eq.s32.totalorder %s20, 0
      %p187 = por %p185, %p186
      %p188 = scmp.ne.s32.totalorder %s180, %s182
      %p189 = scmp.eq.s32.totalorder %s25, 1
      %p190 = por %p188, %p189
      %p191 = scmp.ne.s32.totalorder %s182, %s183
      %p192 = scmp.eq.s32.totalorder %s25, 0
      %p193 = por %p191, %p192
      %p194 = scmp.ne.s32.totalorder %s182, %s183
      %p195 = scmp.eq.s32.totalorder %s26, 1
      %p196 = por %p194, %p195
      %p198 = scmp.ne.s32.totalorder %s183, %s197
      %p199 = scmp.eq.s32.totalorder %s26, 0
      %p200 = por %p198, %p199
      %s202 = sadd.s32 %s201, 1
      %p205 = scmp.eq.s32.totalorder %s20, 1
      %p206 = scmp.ne.s32.totalorder %s201, %s203
      %p207 = scmp.eq.s32.totalorder %s20, 0
      %p208 = por %p206, %p207
      %p209 = scmp.ne.s32.totalorder %s201, %s203
      %p210 = scmp.eq.s32.totalorder %s25, 1
      %p211 = por %p209, %p210
      %p212 = scmp.ne.s32.totalorder %s203, %s204
      %p213 = scmp.eq.s32.totalorder %s25, 0
      %p214 = por %p212, %p213
      %p215 = scmp.ne.s32.totalorder %s203, %s204
      %p216 = scmp.eq.s32.totalorder %s26, 1
      %p217 = por %p215, %p216
      %p219 = scmp.ne.s32.totalorder %s204, %s218
      %p220 = scmp.eq.s32.totalorder %s26, 0
      %p221 = por %p219, %p220
      %s223 = sadd.s32 %s222, 1
      %p226 = scmp.eq.s32.totalorder %s20, 1
      %p227 = scmp.ne.s32.totalorder %s222, %s224
      %p228 = scmp.eq.s32.totalorder %s20, 0
      %p229 = por %p227, %p228
      %p230 = scmp.ne.s32.totalorder %s222, %s224
      %p231 = scmp.eq.s32.totalorder %s25, 1
      %p232 = por %p230, %p231
      %p233 = scmp.ne.s32.totalorder %s224, %s225
      %p234 = scmp.eq.s32.totalorder %s25, 0
      %p235 = por %p233, %p234
      %p236 = scmp.ne.s32.totalorder %s224, %s225
      %p237 = scmp.eq.s32.totalorder %s26, 1
      %p238 = por %p236, %p237
      %p240 = scmp.ne.s32.totalorder %s225, %s239
      %p241 = scmp.eq.s32.totalorder %s26, 0
      %p242 = por %p240, %p241
      %s244 = sadd.s32 %s243, 1
      %p247 = scmp.eq.s32.totalorder %s20, 1
      %p248 = scmp.ne.s32.totalorder %s243, %s245
      %p249 = scmp.eq.s32.totalorder %s20, 0
      %p250 = por %p248, %p249
      %p251 = scmp.ne.s32.totalorder %s243, %s245
      %p252 = scmp.eq.s32.totalorder %s25, 1
      %p253 = por %p251, %p252
      %p254 = scmp.ne.s32.totalorder %s245, %s246
      %p255 = scmp.eq.s32.totalorder %s25, 0
      %p256 = por %p254, %p255
      %p257 = scmp.ne.s32.totalorder %s245, %s246
      %p258 = scmp.eq.s32.totalorder %s26, 1
      %p259 = por %p257, %p258
      %p261 = scmp.ne.s32.totalorder %s246, %s260
      %p262 = scmp.eq.s32.totalorder %s26, 0
      %p263 = por %p261, %p262
      %s264 = ssub.s32 %s20, %s27
      %p265 = scmp.eq.s32.totalorder %s264, 0
      %s267 = sadd.s32 %s266, 1
      %s268 = scalar_select %p265, %s266, %s267
      %p271 = pneg %p265
      %p272 = scmp.eq.s32.totalorder %s20, 1
      %p273 = por %p271, %p272
      %p274 = scmp.ne.s32.totalorder %s266, %s269
      %p275 = scmp.eq.s32.totalorder %s20, 0
      %p276 = por %p274, %p275
      %p277 = scmp.ne.s32.totalorder %s266, %s269
      %p278 = scmp.eq.s32.totalorder %s25, 1
      %p279 = por %p277, %p278
      %p280 = scmp.ne.s32.totalorder %s269, %s270
      %p281 = scmp.eq.s32.totalorder %s25, 0
      %p282 = por %p280, %p281
      %p283 = scmp.ne.s32.totalorder %s269, %s270
      %p284 = scmp.eq.s32.totalorder %s26, 1
      %p285 = por %p283, %p284
      %p287 = scmp.ne.s32.totalorder %s270, %s286
      %p288 = scmp.eq.s32.totalorder %s26, 0
      %p289 = por %p287, %p288
      %p290 = scmp.le.s32.totalorder 1, %s20
      %p291 = scmp.lt.s32.totalorder %s20, 3
      %p292 = pnand %p290, %p291
      %p293 = pneg %p292
      // Predicated region
      $region9: #{_lambda_.1} parent=5 // pred_check
        _
      $region10: #{_lambda_.1} parent=5 // pred_check_branch
        %295 = sbr.rel (%p292) target = $region12
      $region11: #{_lambda_.1} parent=5 // pred_region
        %s296 = ssub.s32 %s20, 1
        // Predicated region
        $region13: #{_lambda_.1} parent=11 // pred_check
          %p297 = pneg %p67
        $region14: #{_lambda_.1} parent=11 // pred_check_branch
          %299 = sbr.rel (%p297) target = $region16
        $region15: #{_lambda_.1} parent=11 // pred_region
          %s301 = ssub.s32 256, 256
          %302 = vsyncadd [#allocation3], %s301
          %s303 = sshll.u32 [#allocation2], 4
          %s304 = int_to_ptr.vmem [resolvable:$true] %s303
          %309 = dma.hbm_to_vmem [thread:$0]  %s1, 256, %s304, [#allocation3], 64, 64, 4
        $region16: #{_lambda_.1} parent=11 // pred_fallthru
          _
        // Predicated region
        $region17: #{_lambda_.1} parent=11 // pred_check
          %p310 = pneg %p88
        $region18: #{_lambda_.1} parent=11 // pred_check_branch
          %312 = sbr.rel (%p310) target = $region20
        $region19: #{_lambda_.1} parent=11 // pred_region
          _
        $region20: #{_lambda_.1} parent=11 // pred_fallthru
          _
        // Predicated region
        $region21: #{_lambda_.1} parent=11 // pred_check
          %p313 = pneg %p109
        $region22: #{_lambda_.1} parent=11 // pred_check_branch
          %315 = sbr.rel (%p313) target = $region24
        $region23: #{_lambda_.1} parent=11 // pred_region
          _
        $region24: #{_lambda_.1} parent=11 // pred_fallthru
          _
        // Predicated region
        $region25: #{_lambda_.1} parent=11 // pred_check
          %p316 = pneg %p130
        $region26: #{_lambda_.1} parent=11 // pred_check_branch
          %318 = sbr.rel (%p316) target = $region28
        $region27: #{_lambda_.1} parent=11 // pred_region
          _
        $region28: #{_lambda_.1} parent=11 // pred_fallthru
          _
        // Predicated region
        $region29: #{_lambda_.1} parent=11 // pred_check
          %p319 = pneg %p151
        $region30: #{_lambda_.1} parent=11 // pred_check_branch
          %321 = sbr.rel (%p319) target = $region32
        $region31: #{_lambda_.1} parent=11 // pred_region
          %s323 = ssub.s32 1024, 1024
          %324 = vsyncadd [#allocation5], %s323
          %s325 = sshll.u32 [#allocation4], 4
          %s326 = int_to_ptr.vmem [resolvable:$true] %s325
          %331 = dma.hbm_to_vmem [thread:$0]  %s5, 1024, %s326, [#allocation5], 64, 64, 4
        $region32: #{_lambda_.1} parent=11 // pred_fallthru
          _
        // Predicated region
        $region33: #{_lambda_.1} parent=11 // pred_check
          %p332 = pneg %p172
        $region34: #{_lambda_.1} parent=11 // pred_check_branch
          %334 = sbr.rel (%p332) target = $region36
        $region35: #{_lambda_.1} parent=11 // pred_region
          _
        $region36: #{_lambda_.1} parent=11 // pred_fallthru
          _
        // Predicated region
        $region37: #{_lambda_.1} parent=11 // pred_check
          %p335 = pneg %p193
        $region38: #{_lambda_.1} parent=11 // pred_check_branch
          %337 = sbr.rel (%p335) target = $region40
        $region39: #{_lambda_.1} parent=11 // pred_region
          %s339 = ssub.s32 512, 512
          %340 = vsyncadd [#allocation5], %s339
          %s341 = sshll.u32 [#allocation6], 4
          %s342 = int_to_ptr.vmem [resolvable:$true] %s341
          %347 = dma.hbm_to_vmem [thread:$0]  %s7, 512, %s342, [#allocation5], 64, 64, 4
        $region40: #{_lambda_.1} parent=11 // pred_fallthru
          _
        // Predicated region
        $region41: #{_lambda_.1} parent=11 // pred_check
          %p348 = pneg %p214
        $region42: #{_lambda_.1} parent=11 // pred_check_branch
          %350 = sbr.rel (%p348) target = $region44
        $region43: #{_lambda_.1} parent=11 // pred_region
          _
        $region44: #{_lambda_.1} parent=11 // pred_fallthru
          _
        // Predicated region
        $region45: #{_lambda_.1} parent=11 // pred_check
          %p351 = pneg %p235
        $region46: #{_lambda_.1} parent=11 // pred_check_branch
          %353 = sbr.rel (%p351) target = $region48
        $region47: #{_lambda_.1} parent=11 // pred_region
          %s355 = ssub.s32 1024, 1024
          %356 = vsyncadd [#allocation8], %s355
          %s357 = sshll.u32 [#allocation7], 4
          %s358 = int_to_ptr.vmem [resolvable:$true] %s357
          %363 = dma.hbm_to_vmem [thread:$0]  %s9, 1024, %s358, [#allocation8], 64, 64, 4
        $region48: #{_lambda_.1} parent=11 // pred_fallthru
          _
        // Predicated region
        $region49: #{_lambda_.1} parent=11 // pred_check
          %p364 = pneg %p256
        $region50: #{_lambda_.1} parent=11 // pred_check_branch
          %366 = sbr.rel (%p364) target = $region52
        $region51: #{_lambda_.1} parent=11 // pred_region
          _
        $region52: #{_lambda_.1} parent=11 // pred_fallthru
          _
      $region12: #{_lambda_.1} parent=5 // pred_fallthru
        _
      %p367 = scmp.lt.s32.totalorder %s20, 2
      // Predicated region
      $region53: #{_lambda_.1} parent=5 // pred_check
        %p368 = pneg %p367
      $region54: #{_lambda_.1} parent=5 // pred_check_branch
        %370 = sbr.rel (%p368) target = $region56
      $region55: #{_lambda_.1} parent=5 // pred_region
        // Predicated region
        $region57: #{_lambda_.1} parent=55 // pred_check
          %p371 = pneg %p40
        $region58: #{_lambda_.1} parent=55 // pred_check_branch
          %373 = sbr.rel (%p371) target = $region60
        $region59: #{_lambda_.1} parent=55 // pred_region
          %p374 = scmp.lt.s32.totalorder %s20, 1
          %s375 = scalar_select %p374, %s20, 1
          %s376 = smul.addr %s375, 8
          %s377 = scalar_lea.vmem %s0, %s376
        $region60: #{_lambda_.1} parent=55 // pred_fallthru
          _
      $region56: #{_lambda_.1} parent=5 // pred_fallthru
        _
      %p378 = scmp.le.s32.totalorder 1, %s20
      %p379 = scmp.lt.s32.totalorder %s20, 3
      %p380 = pnand %p378, %p379
      %p381 = pneg %p380
      // Predicated region
      $region61: #{_lambda_.1} parent=5 // pred_check
        _
      $region62: #{_lambda_.1} parent=5 // pred_check_branch
        %383 = sbr.rel (%p380) target = $region64
      $region63: #{_lambda_.1} parent=5 // pred_region
        %s384 = ssub.s32 %s20, 1
        // Predicated region
        $region65: #{_lambda_.1} parent=63 // pred_check
          %p385 = pneg %p67
        $region66: #{_lambda_.1} parent=63 // pred_check_branch
          %387 = sbr.rel (%p385) target = $region68
        $region67: #{_lambda_.1} parent=63 // pred_region
          %388 = dma.done [#allocation3], 256
        $region68: #{_lambda_.1} parent=63 // pred_fallthru
          _
        // Predicated region
        $region69: #{_lambda_.1} parent=63 // pred_check
          %p389 = pneg %p151
        $region70: #{_lambda_.1} parent=63 // pred_check_branch
          %391 = sbr.rel (%p389) target = $region72
        $region71: #{_lambda_.1} parent=63 // pred_region
          %392 = dma.done [#allocation5], 1024
        $region72: #{_lambda_.1} parent=63 // pred_fallthru
          _
        // Predicated region
        $region73: #{_lambda_.1} parent=63 // pred_check
          %p393 = pneg %p193
        $region74: #{_lambda_.1} parent=63 // pred_check_branch
          %395 = sbr.rel (%p393) target = $region76
        $region75: #{_lambda_.1} parent=63 // pred_region
          %396 = dma.done [#allocation5], 512
        $region76: #{_lambda_.1} parent=63 // pred_fallthru
          _
        // Predicated region
        $region77: #{_lambda_.1} parent=63 // pred_check
          %p397 = pneg %p235
        $region78: #{_lambda_.1} parent=63 // pred_check_branch
          %399 = sbr.rel (%p397) target = $region80
        $region79: #{_lambda_.1} parent=63 // pred_region
          %400 = dma.done [#allocation8], 1024
        $region80: #{_lambda_.1} parent=63 // pred_fallthru
          _
        %p401 = scmp.lt.s32.totalorder %s25, 1
        %s402 = scalar_select %p401, %s25, 1
        %s403 = smul.addr %s402, 8
        %s404 = scalar_lea.vmem %s0, %s403
        %p405 = pneg %p46
        %p406 = pneg %p43
        %p407 = pneg %p67
        %p408 = pneg %p64
        %p409 = pneg %p88
        %p410 = pneg %p85
        %p411 = pneg %p109
        %p412 = pneg %p106
        %p413 = pneg %p130
        %p414 = pneg %p127
        %p415 = pneg %p151
        %p416 = pneg %p148
        %p417 = pneg %p172
        %p418 = pneg %p169
        %p419 = pneg %p193
        %p420 = pneg %p190
        %p421 = pneg %p214
        %p422 = pneg %p211
        %p423 = pneg %p235
        %p424 = pneg %p232
        %p425 = pneg %p256
        %p426 = pneg %p253
        %p427 = pneg %p282
        %p428 = pneg %p279
        %p429 = scmp.lt.s32.totalorder %s25, 1
        %s430 = scalar_select %p429, %s25, 1
        %s431 = smul.addr %s430, 8
        %s432 = scalar_lea.vmem %s11, %s431
        %p433 = scmp.lt.s32.totalorder %s25, 1
        %s434 = scalar_select %p433, %s25, 1
        %s435 = smul.addr %s434, 8
        %s436 = scalar_lea.vmem %s0, %s435
        %p437 = scmp.lt.s32.totalorder %s25, 1
        %s438 = scalar_select %p437, %s25, 1
        %s439 = smul.addr %s438, 8
        %s440 = scalar_lea.vmem %s11, %s439
        %v442 = vld [vmem:[%s436] sm:$0xff]
        %v443 = vpack.c.bf16 %v442, %v442
        %v444 = vld [vmem:[#allocation2] sm:$0xf]
        %v445 = vld [vmem:[#allocation2 + $0x4] sm:$0xf]
        %v446 = vld [vmem:[#allocation2 + $0x8] sm:$0xf]
        %v447 = vld [vmem:[#allocation2 + $0xc] sm:$0xf]
        %v448 = vld [vmem:[%s2] sm:$0x1]
        %v450 = vlaneseq
        %v451 = vshrl.u32 %v450, 7
        %v452 = vsub.s32 0, %v451
        %v453 = vrot.slane %v448, %v452
        %v459 = vunpack.c.l.b16 %v444
        %v460 = vunpack.c.l.b16 %v445
        %v461 = vunpack.c.l.b16 %v446
        %v462 = vunpack.c.l.b16 %v447
        %v463 = vpack.c.b16 %v460, %v459
        %v464 = vpack.c.b16 %v462, %v461
        %vm467 = vcmask 261120
        %v469 = vsel %vm467, %v443, 0
        %471 = vmatprep.subr.bf16.mxu0 0
        %472 = vmatpush1.bf16.msra.mxu0 %v463
        %473 = vmatprep.subr.bf16.mxu0 0
        %474 = vmatpush1.bf16.msra.mxu0 %v464
        %475 = vmatprep.subr.bf16.mxu0 0
        %476 = vmatpush1.bf16.msra.mxu0 0
        %477 = vmatprep.subr.bf16.mxu0 0
        %478 = vmatpush1.bf16.msra.mxu0 0
        %479 = vmatprep.subr.bf16.mxu0 0
        %480 = vmatpush1.bf16.msra.mxu0 0
        %481 = vmatprep.subr.bf16.mxu0 0
        %482 = vmatpush1.bf16.msra.mxu0 0
        %483 = vmatprep.subr.bf16.mxu0 0
        %484 = vmatpush1.bf16.msra.mxu0 0
        %485 = vmatprep.subr.bf16.mxu0 0
        %486 = vmatpush1.bf16.msra.mxu0 0
        %487 = vmatprep.subr.bf16.mxu0 0
        %488 = vmatpush1.bf16.msra.mxu0 0
        %489 = vmatprep.subr.bf16.mxu0 0
        %490 = vmatpush1.bf16.msra.mxu0 0
        %491 = vmatprep.subr.bf16.mxu0 0
        %492 = vmatpush1.bf16.msra.mxu0 0
        %493 = vmatprep.subr.bf16.mxu0 0
        %494 = vmatpush1.bf16.msra.mxu0 0
        %495 = vmatprep.subr.bf16.mxu0 0
        %496 = vmatpush1.bf16.msra.mxu0 0
        %497 = vmatprep.subr.bf16.mxu0 0
        %498 = vmatpush1.bf16.msra.mxu0 0
        %499 = vmatprep.subr.bf16.mxu0 0
        %500 = vmatpush1.bf16.msra.mxu0 0
        %501 = vmatprep.subr.bf16.mxu0 0
        %502 = vmatpush1.bf16.msra.mxu0 0
        %503 = vmatprep.mubr.bf16.mxu0 0
        %504 = vmatmul.mubr.bf16.gmra.mrb[0].mxu0 %v469
        %v505 = vpop.f32.mrb[0].mxu0
        %v506 = vadd.f32 %v453, %v505
        %v507 = vpop.f32.mrb[0].mxu0
        %v508 = vpop.f32.mrb[0].mxu0
        %v509 = vpop.f32.mrb[0].mxu0
        %510 = vdwg.mxu0
        %vm511 = vcmp.gt.f32.partialorder %v506, 0.0
        %v512 = vmul.f32 %v506, 1.442695
        %v513 = vpow.pop %v512
        %v514 = vsub.f32 %v513, 1.0
        %v515 = vmul.f32 %v514, 1.6732632
        %v516 = vsel %vm511, %v506, %v515
        %v517 = vmul.f32 %v516, 1.050701
        %v518 = vpack.c.bf16 %v517, %v517
        %v519 = vld [vmem:[%s3] sm:$0xf]
        %v520 = vld [vmem:[%s3 + $0x4] sm:$0xf]
        %v521 = vld [vmem:[%s3 + $0x8] sm:$0xf]
        %v522 = vld [vmem:[%s3 + $0xc] sm:$0xf]
        %v523 = vld [vmem:[%s3 + $0x10] sm:$0xf]
        %v524 = vld [vmem:[%s3 + $0x14] sm:$0xf]
        %v525 = vld [vmem:[%s3 + $0x18] sm:$0xf]
        %v526 = vld [vmem:[%s3 + $0x1c] sm:$0xf]
        %v527 = vld [vmem:[%s4] sm:$0x1]
        %v529 = vlaneseq
        %v530 = vshrl.u32 %v529, 7
        %v531 = vsub.s32 0, %v530
        %v532 = vrot.slane %v527, %v531
        %v542 = vunpack.c.l.b16 %v519
        %v543 = vunpack.c.l.b16 %v520
        %v544 = vunpack.c.l.b16 %v521
        %v545 = vunpack.c.l.b16 %v522
        %v546 = vunpack.c.l.b16 %v523
        %v547 = vunpack.c.l.b16 %v524
        %v548 = vunpack.c.l.b16 %v525
        %v549 = vunpack.c.l.b16 %v526
        %v550 = vpack.c.b16 %v543, %v542
        %v551 = vpack.c.b16 %v545, %v544
        %v552 = vpack.c.b16 %v547, %v546
        %v553 = vpack.c.b16 %v549, %v548
        %vm558 = vcmask 523264
        %v560 = vsel %vm558, %v518, 0
        %562 = vmatprep.subr.bf16.mxu0 0
        %563 = vmatpush1.bf16.msra.mxu0 %v550
        %564 = vmatprep.subr.bf16.mxu0 0
        %565 = vmatpush1.bf16.msra.mxu0 %v551
        %566 = vmatprep.subr.bf16.mxu0 0
        %567 = vmatpush1.bf16.msra.mxu0 %v552
        %568 = vmatprep.subr.bf16.mxu0 0
        %569 = vmatpush1.bf16.msra.mxu0 %v553
        %570 = vmatprep.subr.bf16.mxu0 0
        %571 = vmatpush1.bf16.msra.mxu0 0
        %572 = vmatprep.subr.bf16.mxu0 0
        %573 = vmatpush1.bf16.msra.mxu0 0
        %574 = vmatprep.subr.bf16.mxu0 0
        %575 = vmatpush1.bf16.msra.mxu0 0
        %576 = vmatprep.subr.bf16.mxu0 0
        %577 = vmatpush1.bf16.msra.mxu0 0
        %578 = vmatprep.subr.bf16.mxu0 0
        %579 = vmatpush1.bf16.msra.mxu0 0
        %580 = vmatprep.subr.bf16.mxu0 0
        %581 = vmatpush1.bf16.msra.mxu0 0
        %582 = vmatprep.subr.bf16.mxu0 0
        %583 = vmatpush1.bf16.msra.mxu0 0
        %584 = vmatprep.subr.bf16.mxu0 0
        %585 = vmatpush1.bf16.msra.mxu0 0
        %586 = vmatprep.subr.bf16.mxu0 0
        %587 = vmatpush1.bf16.msra.mxu0 0
        %588 = vmatprep.subr.bf16.mxu0 0
        %589 = vmatpush1.bf16.msra.mxu0 0
        %590 = vmatprep.subr.bf16.mxu0 0
        %591 = vmatpush1.bf16.msra.mxu0 0
        %592 = vmatprep.subr.bf16.mxu0 0
        %593 = vmatpush1.bf16.msra.mxu0 0
        %594 = vmatprep.mubr.bf16.mxu0 0
        %595 = vmatmul.mubr.bf16.gmra.mrb[0].mxu0 %v560
        %v596 = vpop.f32.mrb[0].mxu0
        %v597 = vadd.f32 %v532, %v596
        %v598 = vpop.f32.mrb[0].mxu0
        %v599 = vpop.f32.mrb[0].mxu0
        %v600 = vpop.f32.mrb[0].mxu0
        %601 = vdwg.mxu0
        %vm602 = vcmp.gt.f32.partialorder %v597, 0.0
        %v603 = vmul.f32 %v597, 1.442695
        %v604 = vpow.pop %v603
        %v605 = vsub.f32 %v604, 1.0
        %v606 = vmul.f32 %v605, 1.6732632
        %v607 = vsel %vm602, %v597, %v606
        %v608 = vmul.f32 %v607, 1.050701
        %v609 = vpack.c.bf16 %v608, %v608
        %v610 = vld [vmem:[#allocation4] sm:$0xf]
        %v611 = vld [vmem:[#allocation4 + $0x4] sm:$0xf]
        %v612 = vld [vmem:[#allocation4 + $0x8] sm:$0xf]
        %v613 = vld [vmem:[#allocation4 + $0xc] sm:$0xf]
        %v614 = vld [vmem:[#allocation4 + $0x10] sm:$0xf]
        %v615 = vld [vmem:[#allocation4 + $0x14] sm:$0xf]
        %v616 = vld [vmem:[#allocation4 + $0x18] sm:$0xf]
        %v617 = vld [vmem:[#allocation4 + $0x1c] sm:$0xf]
        %v618 = vld [vmem:[#allocation4 + $0x20] sm:$0xf]
        %v619 = vld [vmem:[#allocation4 + $0x24] sm:$0xf]
        %v620 = vld [vmem:[#allocation4 + $0x28] sm:$0xf]
        %v621 = vld [vmem:[#allocation4 + $0x2c] sm:$0xf]
        %v622 = vld [vmem:[#allocation4 + $0x30] sm:$0xf]
        %v623 = vld [vmem:[#allocation4 + $0x34] sm:$0xf]
        %v624 = vld [vmem:[#allocation4 + $0x38] sm:$0xf]
        %v625 = vld [vmem:[#allocation4 + $0x3c] sm:$0xf]
        %v626 = vld [vmem:[%s6] sm:$0x1]
        %v628 = vlaneseq
        %v629 = vshrl.u32 %v628, 7
        %v630 = vsub.s32 0, %v629
        %v631 = vrot.slane %v626, %v630
        %v649 = vunpack.c.l.b16 %v610
        %v650 = vunpack.c.l.b16 %v611
        %v651 = vunpack.c.l.b16 %v612
        %v652 = vunpack.c.l.b16 %v613
        %v653 = vunpack.c.l.b16 %v614
        %v654 = vunpack.c.l.b16 %v615
        %v655 = vunpack.c.l.b16 %v616
        %v656 = vunpack.c.l.b16 %v617
        %v657 = vunpack.c.l.b16 %v618
        %v658 = vunpack.c.l.b16 %v619
        %v659 = vunpack.c.l.b16 %v620
        %v660 = vunpack.c.l.b16 %v621
        %v661 = vunpack.c.l.b16 %v622
        %v662 = vunpack.c.l.b16 %v623
        %v663 = vunpack.c.l.b16 %v624
        %v664 = vunpack.c.l.b16 %v625
        %v665 = vpack.c.b16 %v650, %v649
        %v666 = vpack.c.b16 %v652, %v651
        %v667 = vpack.c.b16 %v654, %v653
        %v668 = vpack.c.b16 %v656, %v655
        %v669 = vpack.c.b16 %v658, %v657
        %v670 = vpack.c.b16 %v660, %v659
        %v671 = vpack.c.b16 %v662, %v661
        %v672 = vpack.c.b16 %v664, %v663
        %681 = vmatprep.subr.bf16.mxu0 0
        %682 = vmatpush1.bf16.msra.mxu0 %v665
        %683 = vmatprep.subr.bf16.mxu0 0
        %684 = vmatpush1.bf16.msra.mxu0 %v666
        %685 = vmatprep.subr.bf16.mxu0 0
        %686 = vmatpush1.bf16.msra.mxu0 %v667
        %687 = vmatprep.subr.bf16.mxu0 0
        %688 = vmatpush1.bf16.msra.mxu0 %v668
        %689 = vmatprep.subr.bf16.mxu0 0
        %690 = vmatpush1.bf16.msra.mxu0 %v669
        %691 = vmatprep.subr.bf16.mxu0 0
        %692 = vmatpush1.bf16.msra.mxu0 %v670
        %693 = vmatprep.subr.bf16.mxu0 0
        %694 = vmatpush1.bf16.msra.mxu0 %v671
        %695 = vmatprep.subr.bf16.mxu0 0
        %696 = vmatpush1.bf16.msra.mxu0 %v672
        %697 = vmatprep.subr.bf16.mxu0 0
        %698 = vmatpush1.bf16.msra.mxu0 0
        %699 = vmatprep.subr.bf16.mxu0 0
        %700 = vmatpush1.bf16.msra.mxu0 0
        %701 = vmatprep.subr.bf16.mxu0 0
        %702 = vmatpush1.bf16.msra.mxu0 0
        %703 = vmatprep.subr.bf16.mxu0 0
        %704 = vmatpush1.bf16.msra.mxu0 0
        %705 = vmatprep.subr.bf16.mxu0 0
        %706 = vmatpush1.bf16.msra.mxu0 0
        %707 = vmatprep.subr.bf16.mxu0 0
        %708 = vmatpush1.bf16.msra.mxu0 0
        %709 = vmatprep.subr.bf16.mxu0 0
        %710 = vmatpush1.bf16.msra.mxu0 0
        %711 = vmatprep.subr.bf16.mxu0 0
        %712 = vmatpush1.bf16.msra.mxu0 0
        %713 = vmatprep.mubr.bf16.mxu0 0
        %714 = vmatmul.mubr.bf16.gmra.mrb[0].mxu0 %v609
        %v715 = vpop.f32.mrb[0].mxu0
        %v716 = vadd.f32 %v631, %v715
        %v717 = vpop.f32.mrb[0].mxu0
        %v718 = vpop.f32.mrb[0].mxu0
        %v719 = vpop.f32.mrb[0].mxu0
        %720 = vdwg.mxu0
        %vm721 = vcmp.gt.f32.partialorder %v716, 0.0
        %v722 = vmul.f32 %v716, 1.442695
        %v723 = vpow.pop %v722
        %v724 = vsub.f32 %v723, 1.0
        %v725 = vmul.f32 %v724, 1.6732632
        %v726 = vsel %vm721, %v716, %v725
        %v727 = vmul.f32 %v726, 1.050701
        %v728 = vpack.c.bf16 %v727, %v727
        %v729 = vld [vmem:[#allocation6] sm:$0xf]
        %v730 = vld [vmem:[#allocation6 + $0x4] sm:$0xf]
        %v731 = vld [vmem:[#allocation6 + $0x8] sm:$0xf]
        %v732 = vld [vmem:[#allocation6 + $0xc] sm:$0xf]
        %v733 = vld [vmem:[#allocation6 + $0x10] sm:$0xf]
        %v734 = vld [vmem:[#allocation6 + $0x14] sm:$0xf]
        %v735 = vld [vmem:[#allocation6 + $0x18] sm:$0xf]
        %v736 = vld [vmem:[#allocation6 + $0x1c] sm:$0xf]
        %v737 = vld [vmem:[%s8] sm:$0x1]
        %v739 = vlaneseq
        %v740 = vshrl.u32 %v739, 7
        %v741 = vsub.s32 0, %v740
        %v742 = vrot.slane %v737, %v741
        %v752 = vunpack.c.l.b16 %v729
        %v753 = vunpack.c.l.b16 %v730
        %v754 = vunpack.c.l.b16 %v731
        %v755 = vunpack.c.l.b16 %v732
        %v756 = vunpack.c.l.b16 %v733
        %v757 = vunpack.c.l.b16 %v734
        %v758 = vunpack.c.l.b16 %v735
        %v759 = vunpack.c.l.b16 %v736
        %v760 = vpack.c.b16 %v753, %v752
        %v761 = vpack.c.b16 %v755, %v754
        %v762 = vpack.c.b16 %v757, %v756
        %v763 = vpack.c.b16 %v759, %v758
        %v769 = vsel %vm558, %v728, 0
        %771 = vmatprep.subr.bf16.mxu0 0
        %772 = vmatpush1.bf16.msra.mxu0 %v760
        %773 = vmatprep.subr.bf16.mxu0 0
        %774 = vmatpush1.bf16.msra.mxu0 %v761
        %775 = vmatprep.subr.bf16.mxu0 0
        %776 = vmatpush1.bf16.msra.mxu0 %v762
        %777 = vmatprep.subr.bf16.mxu0 0
        %778 = vmatpush1.bf16.msra.mxu0 %v763
        %779 = vmatprep.subr.bf16.mxu0 0
        %780 = vmatpush1.bf16.msra.mxu0 0
        %781 = vmatprep.subr.bf16.mxu0 0
        %782 = vmatpush1.bf16.msra.mxu0 0
        %783 = vmatprep.subr.bf16.mxu0 0
        %784 = vmatpush1.bf16.msra.mxu0 0
        %785 = vmatprep.subr.bf16.mxu0 0
        %786 = vmatpush1.bf16.msra.mxu0 0
        %787 = vmatprep.subr.bf16.mxu0 0
        %788 = vmatpush1.bf16.msra.mxu0 0
        %789 = vmatprep.subr.bf16.mxu0 0
        %790 = vmatpush1.bf16.msra.mxu0 0
        %791 = vmatprep.subr.bf16.mxu0 0
        %792 = vmatpush1.bf16.msra.mxu0 0
        %793 = vmatprep.subr.bf16.mxu0 0
        %794 = vmatpush1.bf16.msra.mxu0 0
        %795 = vmatprep.subr.bf16.mxu0 0
        %796 = vmatpush1.bf16.msra.mxu0 0
        %797 = vmatprep.subr.bf16.mxu0 0
        %798 = vmatpush1.bf16.msra.mxu0 0
        %799 = vmatprep.subr.bf16.mxu0 0
        %800 = vmatpush1.bf16.msra.mxu0 0
        %801 = vmatprep.subr.bf16.mxu0 0
        %802 = vmatpush1.bf16.msra.mxu0 0
        %803 = vmatprep.mubr.bf16.mxu0 0
        %804 = vmatmul.mubr.bf16.gmra.mrb[0].mxu0 %v769
        %v805 = vpop.f32.mrb[0].mxu0
        %v806 = vadd.f32 %v742, %v805
        %v807 = vpop.f32.mrb[0].mxu0
        %v808 = vpop.f32.mrb[0].mxu0
        %v809 = vpop.f32.mrb[0].mxu0
        %810 = vdwg.mxu0
        %vm811 = vcmp.gt.f32.partialorder %v806, 0.0
        %v812 = vmul.f32 %v806, 1.442695
        %v813 = vpow.pop %v812
        %v814 = vsub.f32 %v813, 1.0
        %v815 = vmul.f32 %v814, 1.6732632
        %v816 = vsel %vm811, %v806, %v815
        %v817 = vmul.f32 %v816, 1.050701
        %v818 = vpack.c.bf16 %v817, %v817
        %v819 = vld [vmem:[#allocation7] sm:$0xf]
        %v820 = vld [vmem:[#allocation7 + $0x4] sm:$0xf]
        %v821 = vld [vmem:[#allocation7 + $0x8] sm:$0xf]
        %v822 = vld [vmem:[#allocation7 + $0xc] sm:$0xf]
        %v823 = vld [vmem:[#allocation7 + $0x10] sm:$0xf]
        %v824 = vld [vmem:[#allocation7 + $0x14] sm:$0xf]
        %v825 = vld [vmem:[#allocation7 + $0x18] sm:$0xf]
        %v826 = vld [vmem:[#allocation7 + $0x1c] sm:$0xf]
        %v827 = vld [vmem:[#allocation7 + $0x20] sm:$0xf]
        %v828 = vld [vmem:[#allocation7 + $0x24] sm:$0xf]
        %v829 = vld [vmem:[#allocation7 + $0x28] sm:$0xf]
        %v830 = vld [vmem:[#allocation7 + $0x2c] sm:$0xf]
        %v831 = vld [vmem:[#allocation7 + $0x30] sm:$0xf]
        %v832 = vld [vmem:[#allocation7 + $0x34] sm:$0xf]
        %v833 = vld [vmem:[#allocation7 + $0x38] sm:$0xf]
        %v834 = vld [vmem:[#allocation7 + $0x3c] sm:$0xf]
        %v835 = vld [vmem:[%s10] sm:$0x1]
        %v837 = vlaneseq
        %v838 = vshrl.u32 %v837, 7
        %v839 = vsub.s32 0, %v838
        %v840 = vrot.slane %v835, %v839
        %v858 = vunpack.c.l.b16 %v819
        %v859 = vunpack.c.l.b16 %v820
        %v860 = vunpack.c.l.b16 %v821
        %v861 = vunpack.c.l.b16 %v822
        %v862 = vunpack.c.l.b16 %v823
        %v863 = vunpack.c.l.b16 %v824
        %v864 = vunpack.c.l.b16 %v825
        %v865 = vunpack.c.l.b16 %v826
        %v866 = vunpack.c.l.b16 %v827
        %v867 = vunpack.c.l.b16 %v828
        %v868 = vunpack.c.l.b16 %v829
        %v869 = vunpack.c.l.b16 %v830
        %v870 = vunpack.c.l.b16 %v831
        %v871 = vunpack.c.l.b16 %v832
        %v872 = vunpack.c.l.b16 %v833
        %v873 = vunpack.c.l.b16 %v834
        %v874 = vpack.c.b16 %v859, %v858
        %v875 = vpack.c.b16 %v861, %v860
        %v876 = vpack.c.b16 %v863, %v862
        %v877 = vpack.c.b16 %v865, %v864
        %v878 = vpack.c.b16 %v867, %v866
        %v879 = vpack.c.b16 %v869, %v868
        %v880 = vpack.c.b16 %v871, %v870
        %v881 = vpack.c.b16 %v873, %v872
        %890 = vmatprep.subr.bf16.mxu0 0
        %891 = vmatpush1.bf16.msra.mxu0 %v874
        %892 = vmatprep.subr.bf16.mxu0 0
        %893 = vmatpush1.bf16.msra.mxu0 %v875
        %894 = vmatprep.subr.bf16.mxu0 0
        %895 = vmatpush1.bf16.msra.mxu0 %v876
        %896 = vmatprep.subr.bf16.mxu0 0
        %897 = vmatpush1.bf16.msra.mxu0 %v877
        %898 = vmatprep.subr.bf16.mxu0 0
        %899 = vmatpush1.bf16.msra.mxu0 %v878
        %900 = vmatprep.subr.bf16.mxu0 0
        %901 = vmatpush1.bf16.msra.mxu0 %v879
        %902 = vmatprep.subr.bf16.mxu0 0
        %903 = vmatpush1.bf16.msra.mxu0 %v880
        %904 = vmatprep.subr.bf16.mxu0 0
        %905 = vmatpush1.bf16.msra.mxu0 %v881
        %906 = vmatprep.subr.bf16.mxu0 0
        %907 = vmatpush1.bf16.msra.mxu0 0
        %908 = vmatprep.subr.bf16.mxu0 0
        %909 = vmatpush1.bf16.msra.mxu0 0
        %910 = vmatprep.subr.bf16.mxu0 0
        %911 = vmatpush1.bf16.msra.mxu0 0
        %912 = vmatprep.subr.bf16.mxu0 0
        %913 = vmatpush1.bf16.msra.mxu0 0
        %914 = vmatprep.subr.bf16.mxu0 0
        %915 = vmatpush1.bf16.msra.mxu0 0
        %916 = vmatprep.subr.bf16.mxu0 0
        %917 = vmatpush1.bf16.msra.mxu0 0
        %918 = vmatprep.subr.bf16.mxu0 0
        %919 = vmatpush1.bf16.msra.mxu0 0
        %920 = vmatprep.subr.bf16.mxu0 0
        %921 = vmatpush1.bf16.msra.mxu0 0
        %922 = vmatprep.mubr.bf16.mxu0 0
        %923 = vmatmul.mubr.bf16.gmra.mrb[0].mxu0 %v818
        %v924 = vpop.f32.mrb[0].mxu0
        %v925 = vadd.f32 %v840, %v924
        %v926 = vpop.f32.mrb[0].mxu0
        %v927 = vpop.f32.mrb[0].mxu0
        %v928 = vpop.f32.mrb[0].mxu0
        %929 = vdwg.mxu0
        %v930 = vadd.f32 %v925, %v608
        %v931 = vadd.f32 %v930, %v817
        %932 = vst [vmem:[%s440] sm:$0xff] %v931
        %p933 = scmp.lt.s32.totalorder %s25, 1
        %s934 = scalar_select %p933, %s25, 1
        %s935 = smul.addr %s934, 8
        %s936 = scalar_lea.vmem %s11, %s935
        // Predicated region
        $region81: #{_lambda_.1} parent=63 // pred_check
          %p937 = pneg %p279
        $region82: #{_lambda_.1} parent=63 // pred_check_branch
          %939 = sbr.rel (%p937) target = $region84
        $region83: #{_lambda_.1} parent=63 // pred_region
          _
        $region84: #{_lambda_.1} parent=63 // pred_fallthru
          _
      $region64: #{_lambda_.1} parent=5 // pred_fallthru
        _
      %p940 = scmp.le.s32.totalorder 2, %s20
      // Predicated region
      $region85: #{_lambda_.1} parent=5 // pred_check
        %p941 = pneg %p940
      $region86: #{_lambda_.1} parent=5 // pred_check_branch
        %943 = sbr.rel (%p941) target = $region88
      $region87: #{_lambda_.1} parent=5 // pred_region
        %s944 = ssub.s32 %s20, 2
        // Predicated region
        $region89: #{_lambda_.1} parent=87 // pred_check
          %p945 = pneg %p285
        $region90: #{_lambda_.1} parent=87 // pred_check_branch
          %947 = sbr.rel (%p945) target = $region92
        $region91: #{_lambda_.1} parent=87 // pred_region
          %p948 = scmp.lt.s32.totalorder %s26, 1
          %s949 = scalar_select %p948, %s26, 1
          %s950 = smul.addr %s949, 8
          %s951 = scalar_lea.vmem %s11, %s950
        $region92: #{_lambda_.1} parent=87 // pred_fallthru
          _
      $region88: #{_lambda_.1} parent=5 // pred_fallthru
        _
    $region6: #{_lambda_.1} parent=1 // loop_footer
      %s24 = sadd.s32 1, %s20
    $region7: #{_lambda_.1} parent=1 // loop_footer_branch
      %19 = sbr.rel target = $region3
    $region8: #{_lambda_.1} parent=1 // loop_exit
      _
    %952 = vsyncpa [#allocation3], 1
    %s953 = scalar_lea.sflag [#allocation3], 1
    %954 = vsyncpa %s953, 1
    %955 = vsyncpa [#allocation5], 1
    %956 = vsyncpa [#allocation8], 1

</llo_original>
